<compile_context>
chip_gen: v7x
topology: tpu7x:2x2x1
jax: 0.10.0
libtpu: 0.0.40
codegen_flags: <defaults>
</compile_context>

<pallas_src>
import jax
import jax.numpy as jnp
from jax import lax
from jax.experimental import pallas as pl
from jax.experimental.pallas import tpu as pltpu

EPS = 1e-8

_TARGET_BLOCK_BYTES = 8 << 20   # ~8 MiB per (tb, C) block (review: aim 2-8 MiB)
_VMEM_LIMIT_BYTES = 48 << 20    # 4 live buffers * 8 MiB + headroom; < 64 MiB (v7x)
_SMALL_INPUT_BYTES = 1 << 20    # below this, plain fused-XLA jnp path wins


def pixel_norm_kernel(x_ref, o_ref):
    """out = x * rsqrt(mean(x^2, axis=-1) + eps); rows are independent."""
    x = x_ref[...]
    xf = x.astype(jnp.float32)
    # Mean of squares along lanes (XLU cross-lane reduce), accumulated in f32.
    ms = jnp.mean(xf * xf, axis=-1, keepdims=True)
    # rsqrt goes to the EUP (separate bundle slot).
    inv = lax.rsqrt(ms + EPS)
    # Scale multiply stays in the native dtype (bf16 VALU on v6e/v7x).
    o_ref[...] = (x * inv.astype(x.dtype)).astype(o_ref.dtype)


def _sublane(itemsize):
    # Rows per sublane pack: 8 for 4-byte, 16 for 2-byte, 32 for 1-byte dtypes.
    return max(8, 32 // int(itemsize))


def _round_up(n, m):
    return -(-n // m) * m


def _pick_tile_b(B, C, itemsize):
    """Largest sublane-aligned batch tile within the VMEM block budget, while
    guaranteeing >= 2 grid steps when there is enough work (v7x megacore)."""
    sub = _sublane(itemsize)
    row_bytes = max(1, C * itemsize)
    tb = max(sub, (_TARGET_BLOCK_BYTES // row_bytes) // sub * sub)
    if B > 2 * sub:
        # Cap so the grid has at least two steps -> both v7x TCs get rows.
        tb = min(tb, _round_up(pl.cdiv(B, 2), sub))
    if tb >= B:
        return B  # full-dim block sidesteps the (sub, 128) divisibility rule
    return tb


def pixel_norm(x, *, tile_b=None, force_pallas=False):
    """Pallas PixelNorm over a (B, C) array; normalizes along axis 1."""
    if x.ndim != 2:
        raise NotImplementedError(
            "wmlp_gan PixelNorm kernel handles 2-D (batch, features) inputs")
    B, C = x.shape
    itemsize = jnp.dtype(x.dtype).itemsize

    # Tiny inputs: pallas_call launch + pipeline prologue dominate; let XLA
    # fuse the plain expression with neighbouring ops instead.
    if not force_pallas and B * C * itemsize < _SMALL_INPUT_BYTES:
        return pixel_norm_ref(x)

    if tile_b is None:
        tb = _pick_tile_b(B, C, itemsize)
    else:
        sub = _sublane(itemsize)
        # Round user tiles up to the dtype's sublane pack (bf16 needs 16).
        tb = B if tile_b >= B else _round_up(min(int(tile_b), B), sub)
    grid_steps = pl.cdiv(B, tb)

    # Fallback when tiles cannot grow (small C): deepen pipelining instead.
    block_kwargs = {}
    if tb * C * itemsize < (1 << 20) and grid_steps >= 4:
        block_kwargs["pipeline_mode"] = pl.Buffered(3)

    in_spec = pl.BlockSpec((tb, C), lambda i: (i, 0), **block_kwargs)
    out_spec = pl.BlockSpec((tb, C), lambda i: (i, 0), **block_kwargs)

    return pl.pallas_call(
        pixel_norm_kernel,
        out_shape=jax.ShapeDtypeStruct((B, C), x.dtype),
        grid_spec=pltpu.PrefetchScalarGridSpec(
            num_scalar_prefetch=0,
            grid=(grid_steps,),
            in_specs=[in_spec],
            out_specs=out_spec,
        ),
        compiler_params=pltpu.CompilerParams(
            dimension_semantics=("parallel",),
            vmem_limit_bytes=_VMEM_LIMIT_BYTES,
        ),
    )(x)


def pixel_norm_ref(x):
    """Pure-JAX reference matching the PyTorch forward.

    Note: the kernel uses rsqrt(mean + eps) rather than a divide by
    sqrt(mean + eps); not bit-identical, but well within 1e-5 tolerance."""
    return x / jnp.sqrt(jnp.mean(x * x, axis=1, keepdims=True) + EPS)


if __name__ == "__main__":
    key = jax.random.PRNGKey(0)
    k1, k2, k3, k4 = jax.random.split(key, 4)

    # 1) Small MLP-GAN-like shape, Pallas path forced (single full-dim block).
    B, C = 8, 256
    x = jax.random.normal(k1, (B, C), jnp.float32)
    out = jax.block_until_ready(pixel_norm(x, force_pallas=True))
    assert out.shape == (B, C)
    assert jnp.allclose(out, pixel_norm_ref(x), atol=1e-5, rtol=1e-5)

    # 1b) Default wrapper path for the same tiny input (fused-XLA fallback).
    out_xla = jax.block_until_ready(pixel_norm(x))
    assert jnp.allclose(out_xla, pixel_norm_ref(x), atol=1e-5, rtol=1e-5)

    # 2) Auto tile selection with enough rows to force >= 2 grid steps
    #    (v7x megacore sharding path) — tb caps at round_up(cdiv(48,2),8)=24.
    B2, C2 = 48, 128
    x2 = jax.random.normal(k2, (B2, C2), jnp.float32)
    out2 = jax.block_until_ready(pixel_norm(x2, force_pallas=True))
    assert jnp.allclose(out2, pixel_norm_ref(x2), atol=1e-5, rtol=1e-5)

    # 3) Multi-block grid with partial last block + deep-buffer (Buffered(3))
    #    fallback branch: 4 KiB blocks, 3 grid steps -> partial crop; then a
    #    longer grid that actually triggers Buffered(3).
    B3, C3 = 20, 128
    x3 = jax.random.normal(k3, (B3, C3), jnp.float32)
    out3 = jax.block_until_ready(pixel_norm(x3, tile_b=8, force_pallas=True))
    assert jnp.allclose(out3, pixel_norm_ref(x3), atol=1e-5, rtol=1e-5)

    B3b, C3b = 64, 128
    x3b = jax.random.normal(k3, (B3b, C3b), jnp.float32)
    out3b = jax.block_until_ready(pixel_norm(x3b, tile_b=8, force_pallas=True))
    assert jnp.allclose(out3b, pixel_norm_ref(x3b), atol=1e-5, rtol=1e-5)

    # 4) bf16 path: f32 accumulation for the mean, bf16 scale multiply,
    #    16-row sublane packing handled by _sublane().
    B4, C4 = 32, 256
    x4 = jax.random.normal(k4, (B4, C4), jnp.float32).astype(jnp.bfloat16)
    out4 = jax.block_until_ready(pixel_norm(x4, force_pallas=True))
    ref4 = pixel_norm_ref(x4.astype(jnp.float32))
    assert out4.dtype == jnp.bfloat16
    assert jnp.allclose(out4.astype(jnp.float32), ref4, atol=2e-2, rtol=2e-2)

    print("KERNEL_OK")
</pallas_src>

<mosaic_0001>
module attributes {stable_mosaic.version = 11 : i64} {
  func.func @pixel_norm_kernel(%arg0: i32, %arg1: memref<8x256xf32, #tpu.memory_space<vmem>>, %arg2: memref<8x256xf32, #tpu.memory_space<vmem>>) attributes {dimension_semantics = [#tpu.dimension_semantics<parallel>], iteration_bounds = array<i64: 1>, scalar_prefetch = 0 : i64, scratch_operands = 0 : i64, tpu.core_type = #tpu.core_type<tc>, window_params = [{transform_indices = @transform_0, window_bounds = array<i64: 8, 256>}, {transform_indices = @transform_1, window_bounds = array<i64: 8, 256>}]} {
    %c0 = arith.constant 0 : index
    %c0_0 = arith.constant 0 : index
    %0 = vector.load %arg1[%c0, %c0_0] : memref<8x256xf32, #tpu.memory_space<vmem>>, vector<8x256xf32>
    %1 = arith.mulf %0, %0 : vector<8x256xf32>
    %cst = arith.constant dense<0.000000e+00> : vector<8xf32>
    %2 = vector.multi_reduction <add>, %1, %cst [1] : vector<8x256xf32> to vector<8xf32>
    %3 = vector.shape_cast %2 : vector<8xf32> to vector<8x1xf32>
    %cst_1 = arith.constant 2.560000e+02 : f32
    %4 = vector.broadcast %cst_1 : f32 to vector<8x1xf32>
    %5 = arith.divf %3, %4 : vector<8x1xf32>
    %cst_2 = arith.constant 9.99999993E-9 : f32
    %6 = vector.broadcast %cst_2 : f32 to vector<8x1xf32>
    %7 = arith.addf %5, %6 : vector<8x1xf32>
    %8 = math.rsqrt %7 : vector<8x1xf32>
    %9 = vector.broadcast %8 : vector<8x1xf32> to vector<8x256xf32>
    %10 = arith.mulf %0, %9 : vector<8x256xf32>
    %c0_3 = arith.constant 0 : index
    %c0_4 = arith.constant 0 : index
    %11 = vector.load %arg2[%c0_3, %c0_4] : memref<8x256xf32, #tpu.memory_space<vmem>>, vector<8x256xf32>
    tpu.vector_store %arg2[%c0_3, %c0_4], %10 {strides = array<i32>} : memref<8x256xf32, #tpu.memory_space<vmem>>, vector<8x256xf32>,
    return
  }
  func.func @transform_0(%arg0: i32) -> (i32, i32) {
    %c0_i32 = arith.constant 0 : i32
    %c0_i32_0 = arith.constant 0 : i32
    return %arg0, %c0_i32 : i32, i32
  }
  func.func @transform_1(%arg0: i32) -> (i32, i32) {
    %c0_i32 = arith.constant 0 : i32
    %c0_i32_0 = arith.constant 0 : i32
    return %arg0, %c0_i32 : i32, i32
  }
}

</mosaic_0001>

<llo_original>
// kernel: tpu_custom_call.1
$region0: #{tpu_custom_call.1}
  #allocation0 [shape = 'u32[]', space=smem, size = 0x4, offset = 0x4, fixed_abs, tag = 'smem constant byte address 0x4 - core index']
  #allocation1 [shape = 'u32[144,128]{1,0:T(1,128)}', space=vmem, size = 0x12000, scoped, tag = 'internal scratch']
  %s0 = inlined_call_operand.hbm [shape: f32[8,256], index: 0, kind: input, shape index: {}]
  %s1 = inlined_call_operand.hbm [shape: f32[8,256], index: 1, kind: output, shape index: {}]
  %s2 = sld [smem:[#allocation0]]
  $region18: #{tpu_custom_call.1} parent=0
    _
  %s4 = ssub.s32 1, %s2
  %s5 = scalar_select 0, %s4, %s2
  $region1: #{tpu_custom_call.1} parent=0
    #allocation2 [shape = 'u8[8192]{0}', space=vmem, size = 0x2000, scoped, tag = 'input window, operand 0, single buffered']
    #allocation3 [shape = 's32[1]{0}', space=sflag, size = 0x4, scoped, tag = 'scoped memory for tpu_custom_call.1']
    #allocation4 [shape = 's32[1]{0}', space=sflag, size = 0x4, scoped, tag = 'scoped memory for tpu_custom_call.1']
    #allocation5 [shape = 'u8[8192]{0}', space=vmem, size = 0x2000, scoped, tag = 'output window, operand 0, single buffered']
    %6 = vsyncpa [#allocation3], 0
    %7 = vsyncpa [#allocation4], 0
    // Predicated region
    $region2: #{tpu_custom_call.1} parent=1 // pred_check
      _
    $region3: #{tpu_custom_call.1} parent=1 // pred_check_branch
      %9 = sbr.rel (0) target = $region5
    $region4: #{tpu_custom_call.1} parent=1 // pred_region
      %s11 = ssub.s32 256, 256
      %12 = vsyncadd [#allocation3], %s11
      %s14 = sshll.u32 [#allocation2], 4
      %s15 = int_to_ptr.vmem [resolvable:$true] %s14
      %17 = dma.hbm_to_vmem [thread:$0]  %s0, 256, %s15, [#allocation3]
    $region5: #{tpu_custom_call.1} parent=1 // pred_fallthru
      _
    // Predicated region
    $region6: #{tpu_custom_call.1} parent=1 // pred_check
      _
    $region7: #{tpu_custom_call.1} parent=1 // pred_check_branch
      %19 = sbr.rel (0) target = $region9
    $region8: #{tpu_custom_call.1} parent=1 // pred_region
      %20 = dma.done [#allocation3], 256
    $region9: #{tpu_custom_call.1} parent=1 // pred_fallthru
      _
    %v21 = vld [vmem:[#allocation2] sm:$0xff]
    %v22 = vld [vmem:[#allocation2 + $0x8] sm:$0xff]
    %v23 = vmul.f32 %v21, %v21
    %v24 = vmul.f32 %v22, %v22
    %v25 = vadd.f32 %v23, %v24
    %26 = vadd.xlane.f32.xlu0 %v25
    %v27 = vpop.xlane.xlu0 %26
    %v28 = vrcp.pop 256.0
    %v29 = vmul.f32 %v27, %v28
    %v30 = vadd.f32 %v29, 1e-08
    %v31 = vrsqrt.pop %v30
    %v32 = vmul.f32 %v21, %v31
    %v33 = vmul.f32 %v22, %v31
    %34 = vst [vmem:[#allocation5] sm:$0xff] %v32
    %35 = vst [vmem:[#allocation5 + $0x8] sm:$0xff] %v33
    // Predicated region
    $region10: #{tpu_custom_call.1} parent=1 // pred_check
      _
    $region11: #{tpu_custom_call.1} parent=1 // pred_check_branch
      %37 = sbr.rel (0) target = $region13
    $region12: #{tpu_custom_call.1} parent=1 // pred_region
      %s39 = ssub.s32 256, 256
      %40 = vsyncadd [#allocation4], %s39
      %s42 = sshll.u32 [#allocation5], 4
      %s43 = int_to_ptr.vmem [resolvable:$true] %s42
      %45 = dma.vmem_to_hbm [thread:$0]  %s43, 256, %s1, [#allocation4]
    $region13: #{tpu_custom_call.1} parent=1 // pred_fallthru
      _
    // Predicated region
    $region14: #{tpu_custom_call.1} parent=1 // pred_check
      _
    $region15: #{tpu_custom_call.1} parent=1 // pred_check_branch
      %47 = sbr.rel (0) target = $region17
    $region16: #{tpu_custom_call.1} parent=1 // pred_region
      %48 = dma.done [#allocation4], 256
    $region17: #{tpu_custom_call.1} parent=1 // pred_fallthru
      _
    %49 = vsyncpa [#allocation3], 1
    %50 = vsyncpa [#allocation4], 1

</llo_original>
